<compile_context>
chip_gen: v7x
topology: tpu7x:2x2x1
jax: 0.10.0
libtpu: 0.0.40
codegen_flags: <defaults>
</compile_context>

<pallas_src>
import jax
import jax.numpy as jnp
from jax import lax
from jax.experimental import pallas as pl
from jax.experimental.pallas import tpu as pltpu


def _round_up(a, b):
    return (a + b - 1) // b * b


# ---------------------------------------------------------------------------
# Kernel 1: fused im2col-matmul + BatchNorm(eval) + ReLU
# ---------------------------------------------------------------------------
def _conv_bn_relu_kernel(a_ref, w_ref, scale_ref, shift_ref, o_ref):
    """o = relu((a @ w) * scale + shift), stored as bf16.

    a:     (TILE_M, K)  bf16 im2col patches (K = 7*7*Cin, unpadded in HBM)
    w:     (K, Cp)      bf16 conv weights   (Cout zero-padded to 128, resident)
    scale: (1, Cp)      f32  gamma / sqrt(var + eps)
    shift: (1, Cp)      f32  beta - mean * scale
    o:     (TILE_M, Cp) bf16 (lane-dense 128-wide stores)
    """
    acc = jnp.dot(a_ref[...], w_ref[...], preferred_element_type=jnp.float32)
    y = acc * scale_ref[...] + shift_ref[...]
    o_ref[...] = jnp.maximum(y, 0.0).astype(o_ref.dtype)


def conv_bn_relu(patches, w_mat, scale, shift, tile_m):
    mp, k = patches.shape
    cp = w_mat.shape[1]
    return pl.pallas_call(
        _conv_bn_relu_kernel,
        out_shape=jax.ShapeDtypeStruct((mp, cp), jnp.bfloat16),
        grid=(mp // tile_m,),
        in_specs=[
            # K (=147) is the full array dim -> legal block, no HBM K padding.
            pl.BlockSpec((tile_m, k), lambda i: (i, 0)),
            pl.BlockSpec((k, cp), lambda i: (0, 0)),    # resident: DMA'd once
            pl.BlockSpec((1, cp), lambda i: (0, 0)),
            pl.BlockSpec((1, cp), lambda i: (0, 0)),
        ],
        out_specs=pl.BlockSpec((tile_m, cp), lambda i: (i, 0)),
        compiler_params=pltpu.CompilerParams(
            dimension_semantics=("parallel",),          # megacore-shardable (v7x)
            vmem_limit_bytes=32 * 1024 * 1024,          # actual usage ~3-6 MiB
        ),
    )(patches, w_mat, scale, shift)


# ---------------------------------------------------------------------------
# Kernel 2: 3x3 / stride-2 max pool on a zero-padded, parity-packed conv output
# ---------------------------------------------------------------------------
def _maxpool3x3s2_kernel(cur_ref, nxt_ref, o_ref):
    """cur: (1, Tp, 2, Wh, 2C) bf16 -- Tp H row-pairs; [:, t, q] is padded row
            2t+q, with the (padded) W axis packed as (Wh, parity*C): even cols in
            lanes [0, C), odd cols in lanes [C, 2C).
       nxt: (1, 1, 2, Wh, 2C) bf16 -- the row-pair directly below the block (halo).
       o:   (1, Tp, Pw, C)   bf16
    Pooled (t, pw) = max over padded rows {2t, 2t+1, 2t+2} x padded cols
    {2pw, 2pw+1, 2pw+2}; 0-padding is exact because the input is post-ReLU.
    Math is done in f32 in-register (cheap, compute is hidden under DMA);
    HBM streams stay bf16.
    """
    pw = o_ref.shape[2]
    c = o_ref.shape[3]

    cur = cur_ref[0].astype(jnp.float32)   # (Tp, 2, Wh, 2C)
    r0 = cur[:, 0]                         # padded rows 2t      (Tp, Wh, 2C)
    r1 = cur[:, 1]                         # padded rows 2t+1
    nxt = nxt_ref[0][0, 0].astype(jnp.float32)   # padded row below block (Wh, 2C)
    if r0.shape[0] > 1:
        r2 = jnp.concatenate([r0[1:], nxt[None]], axis=0)   # padded rows 2t+2
    else:
        r2 = nxt[None]

    m = jnp.maximum(jnp.maximum(r0, r1), r2)   # vertical 3-max  (Tp, Wh, 2C)
    ev = m[:, :, :c]                           # even columns    (Tp, Wh, C)
    od = m[:, :, c:]                           # odd  columns
    out = jnp.maximum(jnp.maximum(ev[:, :pw, :], od[:, :pw, :]),
                      ev[:, 1:pw + 1, :])      # horizontal 3-max (Tp, Pw, C)
    o_ref[0] = out.astype(o_ref.dtype)


def maxpool3x3s2(yq, n, po_pad, pw, cp, tile_p):
    hh, wh = po_pad + 1, pw + 1
    assert yq.shape == (n, hh, 2, wh, 2 * cp)
    assert po_pad % tile_p == 0
    return pl.pallas_call(
        _maxpool3x3s2_kernel,
        out_shape=jax.ShapeDtypeStruct((n, po_pad, pw, cp), jnp.bfloat16),
        grid=(n, po_pad // tile_p),
        in_specs=[
            pl.BlockSpec((1, tile_p, 2, wh, 2 * cp),
                         lambda i, j: (i, j, 0, 0, 0)),
            # same array again, one row-pair below the block (halo); always in
            # bounds because hh = po_pad + 1 and po_pad is a multiple of tile_p.
            pl.BlockSpec((1, 1, 2, wh, 2 * cp),
                         lambda i, j: (i, (j + 1) * tile_p, 0, 0, 0)),
        ],
        out_specs=pl.BlockSpec((1, tile_p, pw, cp), lambda i, j: (i, j, 0, 0)),
        compiler_params=pltpu.CompilerParams(
            dimension_semantics=("parallel", "parallel"),
            vmem_limit_bytes=32 * 1024 * 1024,
        ),
    )(yq, yq)


# ---------------------------------------------------------------------------
# Glue (reshapes / patch extraction) in plain JAX
# ---------------------------------------------------------------------------
def _im2col(x_nhwc, kh, kw, stride, pad):
    n, h, w, c = x_nhwc.shape
    ho = (h + 2 * pad - kh) // stride + 1
    wo = (w + 2 * pad - kw) // stride + 1
    xp = jnp.pad(x_nhwc, ((0, 0), (pad, pad), (pad, pad), (0, 0)))
    cols = []
    for di in range(kh):
        for dj in range(kw):
            cols.append(xp[:, di:di + stride * (ho - 1) + 1:stride,
                           dj:dj + stride * (wo - 1) + 1:stride, :])
    p = jnp.stack(cols, axis=3)                        # (n, ho, wo, kh*kw, c)
    return p.reshape(n * ho * wo, kh * kw * c), ho, wo


def _fold_bn(params):
    inv_std = 1.0 / jnp.sqrt(params["var"] + params["eps"])
    scale = params["gamma"] * inv_std
    shift = params["beta"] - params["mean"] * scale
    return scale.astype(jnp.float32), shift.astype(jnp.float32)


def resnet_extractor_layer1(x_nchw, params):
    """conv1 -> bn1 (eval) -> relu -> maxpool, matching ResNetExtractor(layer=1)."""
    w = params["w"]                                    # (Cout, Cin, 7, 7)
    cout, cin, kh, kw = w.shape
    n = x_nchw.shape[0]

    # NCHW -> NHWC; bf16 feed for the MXU (accumulation stays f32 in-kernel).
    x = jnp.transpose(x_nchw, (0, 2, 3, 1)).astype(jnp.bfloat16)

    # --- conv1 + bn1 + relu: fused, M-tiled Pallas matmul ---
    patches, ho, wo = _im2col(x, kh, kw, stride=2, pad=3)
    m, k = patches.shape
    cp = _round_up(cout, 128)              # lane-dense (128-wide) output stores
    # Large M tiles amortize the ~0.35us/step overhead; K stays unpadded in HBM.
    tile_m = min(2048, _round_up(m, 8))
    mp = _round_up(m, tile_m)
    if mp != m:
        patches = jnp.pad(patches, ((0, mp - m), (0, 0)))

    w_mat = jnp.transpose(w, (2, 3, 1, 0)).reshape(k, cout)
    w_mat = jnp.pad(w_mat, ((0, 0), (0, cp - cout))).astype(jnp.bfloat16)
    scale, shift = _fold_bn(params)
    scale = jnp.pad(scale, (0, cp - cout)).reshape(1, cp)
    shift = jnp.pad(shift, (0, cp - cout)).reshape(1, cp)

    y = conv_bn_relu(patches, w_mat, scale, shift, tile_m)       # (mp, cp) bf16
    y = y[:m].reshape(n, ho, wo, cp)

    # --- maxpool 3x3, stride 2, pad 1 (bf16 in HBM) ---
    po = (ho - 1) // 2 + 1
    pw = (wo - 1) // 2 + 1
    wh = pw + 1

    # Balanced pooled-row tiling under a ~2 MiB main-block budget (whole image
    # per step for a 112x112 stem); Po is padded with zero row-pairs so the
    # halo index stays in bounds and non-divisor tiles are handled exactly.
    bytes_per_pair = 2 * wh * 2 * cp * 2                 # bf16 bytes per row-pair
    budget_pairs = max(1, (2 * 1024 * 1024) // bytes_per_pair)
    steps = pl.cdiv(po, min(po, budget_pairs))
    tile_p = pl.cdiv(po, steps)
    po_pad = steps * tile_p

    # Zero padding is exact post-ReLU.  Pad to exactly 2*(po_pad+1) rows and
    # 2*(pw+1) cols, then split H into (pair, parity) and fold the W parity
    # into the lane axis -- a free row-major reshape (no 9x window stack in HBM).
    yp = jnp.pad(y, ((0, 0), (1, 2 * po_pad + 1 - ho),
                     (1, 2 * pw + 1 - wo), (0, 0)))
    yq = yp.reshape(n, po_pad + 1, 2, wh, 2 * cp)
    pooled = maxpool3x3s2(yq, n, po_pad, pw, cp, tile_p)  # (n, po_pad, pw, cp) bf16

    out = pooled[:, :po, :, :cout].astype(jnp.float32)
    return jnp.transpose(out, (0, 3, 1, 2))               # back to NCHW


# ---------------------------------------------------------------------------
# References for the self-check
# ---------------------------------------------------------------------------
def reference_f32(x_nchw, params):
    """Full-f32 reference (module semantics)."""
    w = params["w"]
    x = jnp.transpose(x_nchw, (0, 2, 3, 1))
    w_hwio = jnp.transpose(w, (2, 3, 1, 0))
    y = lax.conv_general_dilated(
        x, w_hwio, window_strides=(2, 2), padding=((3, 3), (3, 3)),
        dimension_numbers=("NHWC", "HWIO", "NHWC"))
    scale, shift = _fold_bn(params)
    y = jnp.maximum(y * scale + shift, 0.0)
    y = lax.reduce_window(y, -jnp.inf, lax.max, (1, 3, 3, 1), (1, 2, 2, 1),
                          padding=((0, 0), (1, 1), (1, 1), (0, 0)))
    return jnp.transpose(y, (0, 3, 1, 2))


def reference_matched(x_nchw, params):
    """Same arithmetic as the Pallas path (bf16 operands, f32 accumulation, bf16
    conv-output quantization) through XLA's conv/reduce_window -> tight check
    for layout / padding / halo bugs."""
    w = params["w"]
    x = jnp.transpose(x_nchw, (0, 2, 3, 1)).astype(jnp.bfloat16)
    w_hwio = jnp.transpose(w, (2, 3, 1, 0)).astype(jnp.bfloat16)
    y = lax.conv_general_dilated(
        x, w_hwio, window_strides=(2, 2), padding=((3, 3), (3, 3)),
        dimension_numbers=("NHWC", "HWIO", "NHWC"),
        preferred_element_type=jnp.float32)
    scale, shift = _fold_bn(params)
    y = jnp.maximum(y * scale + shift, 0.0)
    # Match the kernel's bf16 store of y (max over bf16 values is exact).
    y = y.astype(jnp.bfloat16).astype(jnp.float32)
    y = lax.reduce_window(y, -jnp.inf, lax.max, (1, 3, 3, 1), (1, 2, 2, 1),
                          padding=((0, 0), (1, 1), (1, 1), (0, 0)))
    return jnp.transpose(y, (0, 3, 1, 2))


if __name__ == "__main__":
    key = jax.random.PRNGKey(0)
    k_x, k_w, k_g, k_b, k_m, k_v = jax.random.split(key, 6)

    N, Cin, H, W = 2, 3, 16, 16          # small synthetic input (NCHW)
    Cout = 8                              # small stand-in for ResNet's 64

    x = jax.random.normal(k_x, (N, Cin, H, W), dtype=jnp.float32)
    params = {
        "w": 0.05 * jax.random.normal(k_w, (Cout, Cin, 7, 7), dtype=jnp.float32),
        "gamma": 1.0 + 0.1 * jax.random.normal(k_g, (Cout,), dtype=jnp.float32),
        "beta": 0.1 * jax.random.normal(k_b, (Cout,), dtype=jnp.float32),
        "mean": 0.1 * jax.random.normal(k_m, (Cout,), dtype=jnp.float32),
        "var": 0.5 + jnp.abs(jax.random.normal(k_v, (Cout,), dtype=jnp.float32)),
        "eps": jnp.float32(1e-5),
    }

    out = jax.block_until_ready(resnet_extractor_layer1(x, params))
    ref_tight = jax.block_until_ready(reference_matched(x, params))
    ref_loose = jax.block_until_ready(reference_f32(x, params))

    assert out.shape == (N, Cout, 4, 4), out.shape

    # Tight check: identical operand rounding and identical bf16 quantization of
    # the conv output; only f32-accumulation-order differences remain, which can
    # at most flip the bf16 rounding of y by one ulp -> rtol 1e-2 covers that
    # while still catching any layout / padding / BlockSpec / halo bug.
    tight_err = jnp.abs(out - ref_tight)
    tight_tol = 1e-3 + 1e-2 * jnp.abs(ref_tight)
    assert bool(jnp.all(tight_err <= tight_tol)), (
        "mismatch vs matched-precision reference: "
        f"max excess {float(jnp.max(tight_err - tight_tol))}")

    # Loose sanity check vs the pure-f32 module semantics; the gap is bounded by
    # the bf16 quantization of the conv operands and output (worst case ~1e-1).
    err_loose = float(jnp.max(jnp.abs(out - ref_loose)))
    assert err_loose < 1e-1, f"mismatch vs f32 reference: {err_loose}"

    print("KERNEL_OK")
</pallas_src>

<mosaic_0001>
module attributes {stable_mosaic.version = 11 : i64} {
  func.func @_conv_bn_relu_kernel(%arg0: i32, %arg1: memref<128x147xbf16, #tpu.memory_space<vmem>>, %arg2: memref<147x128xbf16, #tpu.memory_space<vmem>>, %arg3: memref<1x128xf32, #tpu.memory_space<vmem>>, %arg4: memref<1x128xf32, #tpu.memory_space<vmem>>, %arg5: memref<128x128xbf16, #tpu.memory_space<vmem>>) attributes {dimension_semantics = [#tpu.dimension_semantics<parallel>], iteration_bounds = array<i64: 1>, scalar_prefetch = 0 : i64, scratch_operands = 0 : i64, tpu.core_type = #tpu.core_type<tc>, window_params = [{transform_indices = @transform_0, window_bounds = array<i64: 128, 147>}, {pipeline_mode = #tpu.pipeline_mode<synchronous>, transform_indices = @transform_1, window_bounds = array<i64: 147, 128>}, {pipeline_mode = #tpu.pipeline_mode<synchronous>, transform_indices = @transform_2, window_bounds = array<i64: 1, 128>}, {pipeline_mode = #tpu.pipeline_mode<synchronous>, transform_indices = @transform_3, window_bounds = array<i64: 1, 128>}, {transform_indices = @transform_4, window_bounds = array<i64: 128, 128>}]} {
    %c0 = arith.constant 0 : index
    %c0_0 = arith.constant 0 : index
    %0 = vector.load %arg1[%c0, %c0_0] : memref<128x147xbf16, #tpu.memory_space<vmem>>, vector<128x147xbf16>
    %c0_1 = arith.constant 0 : index
    %c0_2 = arith.constant 0 : index
    %1 = vector.load %arg2[%c0_1, %c0_2] : memref<147x128xbf16, #tpu.memory_space<vmem>>, vector<147x128xbf16>
    %cst = arith.constant dense<0.000000e+00> : vector<128x128xf32>
    %2 = tpu.matmul %0, %1, %cst {dimension_numbers = #tpu.dot_dimension_numbers<[1], [0], [0], [1], [0, 0, 1, 1], [], []>} : vector<128x147xbf16>, vector<147x128xbf16>, vector<128x128xf32> -> vector<128x128xf32>
    %c0_3 = arith.constant 0 : index
    %c0_4 = arith.constant 0 : index
    %3 = vector.load %arg3[%c0_3, %c0_4] : memref<1x128xf32, #tpu.memory_space<vmem>>, vector<1x128xf32>
    %4 = vector.broadcast %3 : vector<1x128xf32> to vector<128x128xf32>
    %5 = arith.mulf %2, %4 : vector<128x128xf32>
    %c0_5 = arith.constant 0 : index
    %c0_6 = arith.constant 0 : index
    %6 = vector.load %arg4[%c0_5, %c0_6] : memref<1x128xf32, #tpu.memory_space<vmem>>, vector<1x128xf32>
    %7 = vector.broadcast %6 : vector<1x128xf32> to vector<128x128xf32>
    %8 = arith.addf %5, %7 : vector<128x128xf32>
    %cst_7 = arith.constant 0.000000e+00 : f32
    %9 = vector.broadcast %cst_7 : f32 to vector<128x128xf32>
    %10 = arith.maximumf %8, %9 : vector<128x128xf32>
    %11 = arith.truncf %10 : vector<128x128xf32> to vector<128x128xbf16>
    %c0_8 = arith.constant 0 : index
    %c0_9 = arith.constant 0 : index
    %12 = vector.load %arg5[%c0_8, %c0_9] : memref<128x128xbf16, #tpu.memory_space<vmem>>, vector<128x128xbf16>
    tpu.vector_store %arg5[%c0_8, %c0_9], %11 {strides = array<i32>} : memref<128x128xbf16, #tpu.memory_space<vmem>>, vector<128x128xbf16>,
    return
  }
  func.func @transform_0(%arg0: i32) -> (i32, i32) {
    %c0_i32 = arith.constant 0 : i32
    %c0_i32_0 = arith.constant 0 : i32
    return %arg0, %c0_i32 : i32, i32
  }
  func.func @transform_1(%arg0: i32) -> (i32, i32) {
    %c0_i32 = arith.constant 0 : i32
    %c0_i32_0 = arith.constant 0 : i32
    %c0_i32_1 = arith.constant 0 : i32
    return %c0_i32, %c0_i32_0 : i32, i32
  }
  func.func @transform_2(%arg0: i32) -> (i32, i32) {
    %c0_i32 = arith.constant 0 : i32
    %c0_i32_0 = arith.constant 0 : i32
    %c0_i32_1 = arith.constant 0 : i32
    return %c0_i32, %c0_i32_0 : i32, i32
  }
  func.func @transform_3(%arg0: i32) -> (i32, i32) {
    %c0_i32 = arith.constant 0 : i32
    %c0_i32_0 = arith.constant 0 : i32
    %c0_i32_1 = arith.constant 0 : i32
    return %c0_i32, %c0_i32_0 : i32, i32
  }
  func.func @transform_4(%arg0: i32) -> (i32, i32) {
    %c0_i32 = arith.constant 0 : i32
    %c0_i32_0 = arith.constant 0 : i32
    return %arg0, %c0_i32 : i32, i32
  }
}

</mosaic_0001>

<llo_original>
// kernel: tpu_custom_call.1
$region0: #{tpu_custom_call.1}
  #allocation0 [shape = 'u32[]', space=smem, size = 0x4, offset = 0x4, fixed_abs, tag = 'smem constant byte address 0x4 - core index']
  #allocation1 [shape = 'u32[144,128]{1,0:T(1,128)}', space=vmem, size = 0x12000, scoped, tag = 'internal scratch']
  %s0 = inlined_call_operand.vmem [shape: bf16[128,147], index: 0, kind: input, shape index: {}]
  %s1 = inlined_call_operand.vmem [shape: bf16[147,128], index: 1, kind: input, shape index: {}]
  %s2 = inlined_call_operand.vmem [shape: f32[1,128], index: 2, kind: input, shape index: {}]
  %s3 = inlined_call_operand.vmem [shape: f32[1,128], index: 3, kind: input, shape index: {}]
  %s4 = inlined_call_operand.hbm [shape: bf16[128,128], index: 4, kind: output, shape index: {}]
  %s5 = sld [smem:[#allocation0]]
  $region26: #{tpu_custom_call.1} parent=0
    _
  %s7 = ssub.s32 1, %s5
  %s8 = scalar_select 0, %s7, %s5
  $region1: #{tpu_custom_call.1} parent=0
    #allocation2 [shape = 'u8[32768]{0}', space=vmem, size = 0x8000, scoped, tag = 'output window, operand 0, single buffered']
    #allocation3 [shape = 's32[1]{0}', space=sflag, size = 0x4, scoped, tag = 'scoped memory for tpu_custom_call.1']
    %9 = vsyncpa [#allocation3], 0
    // Predicated region
    $region2: #{tpu_custom_call.1} parent=1 // pred_check
      _
    $region3: #{tpu_custom_call.1} parent=1 // pred_check_branch
      %11 = sbr.rel (0) target = $region5
    $region4: #{tpu_custom_call.1} parent=1 // pred_region
      _
    $region5: #{tpu_custom_call.1} parent=1 // pred_fallthru
      _
    // Predicated region
    $region6: #{tpu_custom_call.1} parent=1 // pred_check
      _
    $region7: #{tpu_custom_call.1} parent=1 // pred_check_branch
      %13 = sbr.rel (0) target = $region9
    $region8: #{tpu_custom_call.1} parent=1 // pred_region
      _
    $region9: #{tpu_custom_call.1} parent=1 // pred_fallthru
      _
    // Predicated region
    $region10: #{tpu_custom_call.1} parent=1 // pred_check
      _
    $region11: #{tpu_custom_call.1} parent=1 // pred_check_branch
      %15 = sbr.rel (0) target = $region13
    $region12: #{tpu_custom_call.1} parent=1 // pred_region
      _
    $region13: #{tpu_custom_call.1} parent=1 // pred_fallthru
      _
    // Predicated region
    $region14: #{tpu_custom_call.1} parent=1 // pred_check
      _
    $region15: #{tpu_custom_call.1} parent=1 // pred_check_branch
      %17 = sbr.rel (0) target = $region17
    $region16: #{tpu_custom_call.1} parent=1 // pred_region
      _
    $region17: #{tpu_custom_call.1} parent=1 // pred_fallthru
      _
    %v19 = vld [vmem:[%s0] sm:$0xff]
    %v20 = vld [vmem:[%s0 + $0x8] sm:$0xff]
    %v21 = vld [vmem:[%s0 + $0x10] sm:$0xff]
    %v22 = vld [vmem:[%s0 + $0x18] sm:$0xff]
    %v23 = vld [vmem:[%s0 + $0x20] sm:$0xff]
    %v24 = vld [vmem:[%s0 + $0x28] sm:$0xff]
    %v25 = vld [vmem:[%s0 + $0x30] sm:$0xff]
    %v26 = vld [vmem:[%s0 + $0x38] sm:$0xff]
    %v27 = vld [vmem:[%s0 + $0x40] sm:$0xff]
    %v28 = vld [vmem:[%s0 + $0x48] sm:$0xff]
    %v29 = vld [vmem:[%s0 + $0x50] sm:$0xff]
    %v30 = vld [vmem:[%s0 + $0x58] sm:$0xff]
    %v31 = vld [vmem:[%s0 + $0x60] sm:$0xff]
    %v32 = vld [vmem:[%s0 + $0x68] sm:$0xff]
    %v33 = vld [vmem:[%s0 + $0x70] sm:$0xff]
    %v34 = vld [vmem:[%s0 + $0x78] sm:$0xff]
    %v35 = vld [vmem:[%s1] sm:$0xf]
    %v36 = vld [vmem:[%s1 + $0x4] sm:$0xf]
    %v37 = vld [vmem:[%s1 + $0x8] sm:$0xf]
    %v38 = vld [vmem:[%s1 + $0xc] sm:$0xf]
    %v39 = vld [vmem:[%s1 + $0x10] sm:$0xf]
    %v40 = vld [vmem:[%s1 + $0x14] sm:$0xf]
    %v41 = vld [vmem:[%s1 + $0x18] sm:$0xf]
    %v42 = vld [vmem:[%s1 + $0x1c] sm:$0xf]
    %v43 = vld [vmem:[%s1 + $0x20] sm:$0xf]
    %v44 = vld [vmem:[%s1 + $0x24] sm:$0xf]
    %v45 = vld [vmem:[%s1 + $0x28] sm:$0xf]
    %v46 = vld [vmem:[%s1 + $0x2c] sm:$0xf]
    %v47 = vld [vmem:[%s1 + $0x30] sm:$0xf]
    %v48 = vld [vmem:[%s1 + $0x34] sm:$0xf]
    %v49 = vld [vmem:[%s1 + $0x38] sm:$0xf]
    %v50 = vld [vmem:[%s1 + $0x3c] sm:$0xf]
    %v51 = vld [vmem:[%s1 + $0x40] sm:$0xf]
    %v52 = vld [vmem:[%s1 + $0x44] sm:$0xf]
    %v53 = vld [vmem:[%s1 + $0x48] sm:$0x3]
    %v70 = vunpack.c.l.b16 %v19
    %v71 = vunpack.c.h.b16 %v19
    %v72 = vunpack.c.l.b16 %v20
    %v73 = vunpack.c.h.b16 %v20
    %v74 = vunpack.c.l.b16 %v21
    %v75 = vunpack.c.h.b16 %v21
    %v76 = vunpack.c.l.b16 %v22
    %v77 = vunpack.c.h.b16 %v22
    %v78 = vunpack.c.l.b16 %v23
    %v79 = vunpack.c.h.b16 %v23
    %v80 = vunpack.c.l.b16 %v24
    %v81 = vunpack.c.h.b16 %v24
    %v82 = vunpack.c.l.b16 %v25
    %v83 = vunpack.c.h.b16 %v25
    %v84 = vunpack.c.l.b16 %v26
    %v85 = vunpack.c.h.b16 %v26
    %v86 = vunpack.c.l.b16 %v27
    %v87 = vunpack.c.h.b16 %v27
    %v88 = vunpack.c.l.b16 %v28
    %v89 = vunpack.c.h.b16 %v28
    %v90 = vunpack.c.l.b16 %v29
    %v91 = vunpack.c.h.b16 %v29
    %v92 = vunpack.c.l.b16 %v30
    %v93 = vunpack.c.h.b16 %v30
    %v94 = vunpack.c.l.b16 %v31
    %v95 = vunpack.c.h.b16 %v31
    %v96 = vunpack.c.l.b16 %v32
    %v97 = vunpack.c.h.b16 %v32
    %v98 = vunpack.c.l.b16 %v33
    %v99 = vunpack.c.h.b16 %v33
    %v100 = vunpack.c.l.b16 %v34
    %v101 = vunpack.c.h.b16 %v34
    %v102 = vpack.c.b16 %v72, %v70
    %v103 = vpack.c.b16 %v73, %v71
    %v104 = vpack.c.b16 %v76, %v74
    %v105 = vpack.c.b16 %v77, %v75
    %v106 = vpack.c.b16 %v80, %v78
    %v107 = vpack.c.b16 %v81, %v79
    %v108 = vpack.c.b16 %v84, %v82
    %v109 = vpack.c.b16 %v85, %v83
    %v110 = vpack.c.b16 %v88, %v86
    %v111 = vpack.c.b16 %v89, %v87
    %v112 = vpack.c.b16 %v92, %v90
    %v113 = vpack.c.b16 %v93, %v91
    %v114 = vpack.c.b16 %v96, %v94
    %v115 = vpack.c.b16 %v97, %v95
    %v116 = vpack.c.b16 %v100, %v98
    %v117 = vpack.c.b16 %v101, %v99
    %v145 = vunpack.c.l.b16 %v35
    %v146 = vunpack.c.l.b16 %v36
    %v147 = vunpack.c.l.b16 %v37
    %v148 = vunpack.c.l.b16 %v38
    %v149 = vunpack.c.l.b16 %v39
    %v150 = vunpack.c.l.b16 %v40
    %v151 = vunpack.c.l.b16 %v41
    %v152 = vunpack.c.l.b16 %v42
    %v153 = vunpack.c.l.b16 %v43
    %v154 = vunpack.c.l.b16 %v44
    %v155 = vunpack.c.l.b16 %v45
    %v156 = vunpack.c.l.b16 %v46
    %v157 = vunpack.c.l.b16 %v47
    %v158 = vunpack.c.l.b16 %v48
    %v159 = vunpack.c.l.b16 %v49
    %v160 = vunpack.c.l.b16 %v50
    %v161 = vunpack.c.l.b16 %v51
    %v162 = vunpack.c.l.b16 %v52
    %v163 = vunpack.c.l.b16 %v53
    %v164 = vpack.c.b16 %v146, %v145
    %v165 = vpack.c.b16 %v148, %v147
    %v166 = vpack.c.b16 %v150, %v149
    %v167 = vpack.c.b16 %v152, %v151
    %v168 = vpack.c.b16 %v154, %v153
    %v169 = vpack.c.b16 %v156, %v155
    %v170 = vpack.c.b16 %v158, %v157
    %v171 = vpack.c.b16 %v160, %v159
    %v172 = vpack.c.b16 %v162, %v161
    %v173 = vpack.c.b16 %v163, %v163
    %vm183 = vcmask 154624
    %v185 = vsel %vm183, %v103, 0
    %v188 = vsel %vm183, %v105, 0
    %v191 = vsel %vm183, %v107, 0
    %v194 = vsel %vm183, %v109, 0
    %v197 = vsel %vm183, %v111, 0
    %v200 = vsel %vm183, %v113, 0
    %v203 = vsel %vm183, %v115, 0
    %v206 = vsel %vm183, %v117, 0
    %vm208 = vcmask 1040384
    %vm209 = vcmask 1041408
    %v210 = vsel %vm208, 4294967295, 65535
    %v211 = vsel %vm209, %v210, 0
    %v213 = vand.u32 %v173, %v211
    %215 = vmatprep.subr.bf16.mxu0 0
    %216 = vmatpush1.bf16.msra.mxu0 %v164
    %217 = vmatprep.subr.bf16.mxu0 0
    %218 = vmatpush1.bf16.msra.mxu0 %v165
    %219 = vmatprep.subr.bf16.mxu0 0
    %220 = vmatpush1.bf16.msra.mxu0 %v166
    %221 = vmatprep.subr.bf16.mxu0 0
    %222 = vmatpush1.bf16.msra.mxu0 %v167
    %223 = vmatprep.subr.bf16.mxu0 0
    %224 = vmatpush1.bf16.msra.mxu0 %v168
    %225 = vmatprep.subr.bf16.mxu0 0
    %226 = vmatpush1.bf16.msra.mxu0 %v169
    %227 = vmatprep.subr.bf16.mxu0 0
    %228 = vmatpush1.bf16.msra.mxu0 %v170
    %229 = vmatprep.subr.bf16.mxu0 0
    %230 = vmatpush1.bf16.msra.mxu0 %v171
    %231 = vmatprep.subr.bf16.mxu0 0
    %232 = vmatpush1.bf16.msra.mxu0 %v172
    %233 = vmatprep.subr.bf16.mxu0 0
    %234 = vmatpush1.bf16.msra.mxu0 %v213
    %235 = vmatprep.subr.bf16.mxu0 0
    %236 = vmatpush1.bf16.msra.mxu0 0
    %237 = vmatprep.subr.bf16.mxu0 0
    %238 = vmatpush1.bf16.msra.mxu0 0
    %239 = vmatprep.subr.bf16.mxu0 0
    %240 = vmatpush1.bf16.msra.mxu0 0
    %241 = vmatprep.subr.bf16.mxu0 0
    %242 = vmatpush1.bf16.msra.mxu0 0
    %243 = vmatprep.subr.bf16.mxu0 0
    %244 = vmatpush1.bf16.msra.mxu0 0
    %245 = vmatprep.subr.bf16.mxu0 0
    %246 = vmatpush1.bf16.msra.mxu0 0
    %247 = vmatprep.mubr.bf16.mxu0 %v185
    %248 = vmatmul.mubr.bf16.gmra.mrb[0].mxu0 %v102
    %v249 = vpop.f32.mrb[0].mxu0
    %v250 = vadd.f32 0.0, %v249
    %v251 = vpop.f32.mrb[0].mxu0
    %v252 = vpop.f32.mrb[0].mxu0
    %v253 = vadd.f32 0.0, %v252
    %v254 = vpop.f32.mrb[0].mxu0
    %255 = vmatprep.mubr.bf16.mxu0 %v188
    %256 = vmatmul.mubr.bf16.gmra.mrb[0].mxu0 %v104
    %v257 = vpop.f32.mrb[0].mxu0
    %v258 = vadd.f32 0.0, %v257
    %v259 = vpop.f32.mrb[0].mxu0
    %v260 = vpop.f32.mrb[0].mxu0
    %v261 = vadd.f32 0.0, %v260
    %v262 = vpop.f32.mrb[0].mxu0
    %263 = vmatprep.mubr.bf16.mxu0 %v191
    %264 = vmatmul.mubr.bf16.gmra.mrb[0].mxu0 %v106
    %v265 = vpop.f32.mrb[0].mxu0
    %v266 = vadd.f32 0.0, %v265
    %v267 = vpop.f32.mrb[0].mxu0
    %v268 = vpop.f32.mrb[0].mxu0
    %v269 = vadd.f32 0.0, %v268
    %v270 = vpop.f32.mrb[0].mxu0
    %271 = vmatprep.mubr.bf16.mxu0 %v194
    %272 = vmatmul.mubr.bf16.gmra.mrb[0].mxu0 %v108
    %v273 = vpop.f32.mrb[0].mxu0
    %v274 = vadd.f32 0.0, %v273
    %v275 = vpop.f32.mrb[0].mxu0
    %v276 = vpop.f32.mrb[0].mxu0
    %v277 = vadd.f32 0.0, %v276
    %v278 = vpop.f32.mrb[0].mxu0
    %279 = vmatprep.mubr.bf16.mxu0 %v197
    %280 = vmatmul.mubr.bf16.gmra.mrb[0].mxu0 %v110
    %v281 = vpop.f32.mrb[0].mxu0
    %v282 = vadd.f32 0.0, %v281
    %v283 = vpop.f32.mrb[0].mxu0
    %v284 = vpop.f32.mrb[0].mxu0
    %v285 = vadd.f32 0.0, %v284
    %v286 = vpop.f32.mrb[0].mxu0
    %287 = vmatprep.mubr.bf16.mxu0 %v200
    %288 = vmatmul.mubr.bf16.gmra.mrb[0].mxu0 %v112
    %v289 = vpop.f32.mrb[0].mxu0
    %v290 = vadd.f32 0.0, %v289
    %v291 = vpop.f32.mrb[0].mxu0
    %v292 = vpop.f32.mrb[0].mxu0
    %v293 = vadd.f32 0.0, %v292
    %v294 = vpop.f32.mrb[0].mxu0
    %295 = vmatprep.mubr.bf16.mxu0 %v203
    %296 = vmatmul.mubr.bf16.gmra.mrb[0].mxu0 %v114
    %v297 = vpop.f32.mrb[0].mxu0
    %v298 = vadd.f32 0.0, %v297
    %v299 = vpop.f32.mrb[0].mxu0
    %v300 = vpop.f32.mrb[0].mxu0
    %v301 = vadd.f32 0.0, %v300
    %v302 = vpop.f32.mrb[0].mxu0
    %303 = vmatprep.mubr.bf16.mxu0 %v206
    %304 = vmatmul.mubr.bf16.gmra.mrb[0].mxu0 %v116
    %v305 = vpop.f32.mrb[0].mxu0
    %v306 = vadd.f32 0.0, %v305
    %v307 = vpop.f32.mrb[0].mxu0
    %v308 = vpop.f32.mrb[0].mxu0
    %v309 = vadd.f32 0.0, %v308
    %v310 = vpop.f32.mrb[0].mxu0
    %311 = vdwg.mxu0
    %v312 = vld [vmem:[%s2] sm:$0x1]
    %v314 = vlaneseq
    %v315 = vshrl.u32 %v314, 7
    %v316 = vsub.s32 0, %v315
    %v317 = vrot.slane %v312, %v316
    %v319 = vmul.f32 %v250, %v317
    %v320 = vmul.f32 %v253, %v317
    %v321 = vmul.f32 %v258, %v317
    %v322 = vmul.f32 %v261, %v317
    %v323 = vmul.f32 %v266, %v317
    %v324 = vmul.f32 %v269, %v317
    %v325 = vmul.f32 %v274, %v317
    %v326 = vmul.f32 %v277, %v317
    %v327 = vmul.f32 %v282, %v317
    %v328 = vmul.f32 %v285, %v317
    %v329 = vmul.f32 %v290, %v317
    %v330 = vmul.f32 %v293, %v317
    %v331 = vmul.f32 %v298, %v317
    %v332 = vmul.f32 %v301, %v317
    %v333 = vmul.f32 %v306, %v317
    %v334 = vmul.f32 %v309, %v317
    %v335 = vld [vmem:[%s3] sm:$0x1]
    %v337 = vlaneseq
    %v338 = vshrl.u32 %v337, 7
    %v339 = vsub.s32 0, %v338
    %v340 = vrot.slane %v335, %v339
    %v342 = vadd.f32 %v319, %v340
    %v343 = vadd.f32 %v320, %v340
    %v344 = vadd.f32 %v321, %v340
    %v345 = vadd.f32 %v322, %v340
    %v346 = vadd.f32 %v323, %v340
    %v347 = vadd.f32 %v324, %v340
    %v348 = vadd.f32 %v325, %v340
    %v349 = vadd.f32 %v326, %v340
    %v350 = vadd.f32 %v327, %v340
    %v351 = vadd.f32 %v328, %v340
    %v352 = vadd.f32 %v329, %v340
    %v353 = vadd.f32 %v330, %v340
    %v354 = vadd.f32 %v331, %v340
    %v355 = vadd.f32 %v332, %v340
    %v356 = vadd.f32 %v333, %v340
    %v357 = vadd.f32 %v334, %v340
    %v358 = vmax.f32 %v342, 0.0
    %v359 = vmax.f32 %v343, 0.0
    %v360 = vmax.f32 %v344, 0.0
    %v361 = vmax.f32 %v345, 0.0
    %v362 = vmax.f32 %v346, 0.0
    %v363 = vmax.f32 %v347, 0.0
    %v364 = vmax.f32 %v348, 0.0
    %v365 = vmax.f32 %v349, 0.0
    %v366 = vmax.f32 %v350, 0.0
    %v367 = vmax.f32 %v351, 0.0
    %v368 = vmax.f32 %v352, 0.0
    %v369 = vmax.f32 %v353, 0.0
    %v370 = vmax.f32 %v354, 0.0
    %v371 = vmax.f32 %v355, 0.0
    %v372 = vmax.f32 %v356, 0.0
    %v373 = vmax.f32 %v357, 0.0
    %v374 = vpack.c.bf16 %v359, %v358
    %v375 = vpack.c.bf16 %v361, %v360
    %v376 = vpack.c.bf16 %v363, %v362
    %v377 = vpack.c.bf16 %v365, %v364
    %v378 = vpack.c.bf16 %v367, %v366
    %v379 = vpack.c.bf16 %v369, %v368
    %v380 = vpack.c.bf16 %v371, %v370
    %v381 = vpack.c.bf16 %v373, %v372
    %v390 = vunpack.c.l.b16 %v374
    %v391 = vunpack.c.h.b16 %v374
    %v392 = vunpack.c.l.b16 %v375
    %v393 = vunpack.c.h.b16 %v375
    %v394 = vunpack.c.l.b16 %v376
    %v395 = vunpack.c.h.b16 %v376
    %v396 = vunpack.c.l.b16 %v377
    %v397 = vunpack.c.h.b16 %v377
    %v398 = vunpack.c.l.b16 %v378
    %v399 = vunpack.c.h.b16 %v378
    %v400 = vunpack.c.l.b16 %v379
    %v401 = vunpack.c.h.b16 %v379
    %v402 = vunpack.c.l.b16 %v380
    %v403 = vunpack.c.h.b16 %v380
    %v404 = vunpack.c.l.b16 %v381
    %v405 = vunpack.c.h.b16 %v381
    %v406 = vpack.c.b16 %v390, %v390
    %v407 = vpack.c.b16 %v391, %v391
    %v408 = vpack.c.b16 %v392, %v392
    %v409 = vpack.c.b16 %v393, %v393
    %v410 = vpack.c.b16 %v394, %v394
    %v411 = vpack.c.b16 %v395, %v395
    %v412 = vpack.c.b16 %v396, %v396
    %v413 = vpack.c.b16 %v397, %v397
    %v414 = vpack.c.b16 %v398, %v398
    %v415 = vpack.c.b16 %v399, %v399
    %v416 = vpack.c.b16 %v400, %v400
    %v417 = vpack.c.b16 %v401, %v401
    %v418 = vpack.c.b16 %v402, %v402
    %v419 = vpack.c.b16 %v403, %v403
    %v420 = vpack.c.b16 %v404, %v404
    %v421 = vpack.c.b16 %v405, %v405
    %438 = vst [vmem:[#allocation2] sm:$0xf] %v406
    %439 = vst [vmem:[#allocation2 + $0x4] sm:$0xf] %v407
    %440 = vst [vmem:[#allocation2 + $0x8] sm:$0xf] %v408
    %441 = vst [vmem:[#allocation2 + $0xc] sm:$0xf] %v409
    %442 = vst [vmem:[#allocation2 + $0x10] sm:$0xf] %v410
    %443 = vst [vmem:[#allocation2 + $0x14] sm:$0xf] %v411
    %444 = vst [vmem:[#allocation2 + $0x18] sm:$0xf] %v412
    %445 = vst [vmem:[#allocation2 + $0x1c] sm:$0xf] %v413
    %446 = vst [vmem:[#allocation2 + $0x20] sm:$0xf] %v414
    %447 = vst [vmem:[#allocation2 + $0x24] sm:$0xf] %v415
    %448 = vst [vmem:[#allocation2 + $0x28] sm:$0xf] %v416
    %449 = vst [vmem:[#allocation2 + $0x2c] sm:$0xf] %v417
    %450 = vst [vmem:[#allocation2 + $0x30] sm:$0xf] %v418
    %451 = vst [vmem:[#allocation2 + $0x34] sm:$0xf] %v419
    %452 = vst [vmem:[#allocation2 + $0x38] sm:$0xf] %v420
    %453 = vst [vmem:[#allocation2 + $0x3c] sm:$0xf] %v421
    // Predicated region
    $region18: #{tpu_custom_call.1} parent=1 // pred_check
      _
    $region19: #{tpu_custom_call.1} parent=1 // pred_check_branch
      %455 = sbr.rel (0) target = $region21
    $region20: #{tpu_custom_call.1} parent=1 // pred_region
      %s457 = ssub.s32 1024, 1024
      %458 = vsyncadd [#allocation3], %s457
      %s459 = sshll.u32 [#allocation2], 4
      %s460 = int_to_ptr.vmem [resolvable:$true] %s459
      %465 = dma.vmem_to_hbm [thread:$0]  %s460, 1024, %s4, [#allocation3], 64, 64, 4
    $region21: #{tpu_custom_call.1} parent=1 // pred_fallthru
      _
    // Predicated region
    $region22: #{tpu_custom_call.1} parent=1 // pred_check
      _
    $region23: #{tpu_custom_call.1} parent=1 // pred_check_branch
      %467 = sbr.rel (0) target = $region25
    $region24: #{tpu_custom_call.1} parent=1 // pred_region
      %468 = dma.done [#allocation3], 1024
    $region25: #{tpu_custom_call.1} parent=1 // pred_fallthru
      _
    %469 = vsyncpa [#allocation3], 1

</llo_original>
